<compile_context>
chip_gen: v7x
topology: tpu7x:2x2x1
jax: 0.10.0
libtpu: 0.0.40
codegen_flags: <defaults>
</compile_context>

<pallas_src>
import jax
import jax.numpy as jnp
from jax import lax
from jax.experimental import pallas as pl
from jax.experimental.pallas import tpu as pltpu


def _ffn_kernel(x_ref, w1_ref, b1_ref, w2_ref, b2_ref, o_ref):
    # x_ref: (B, 10)    w1_ref: (50, 10)   b1_ref: (50, 1)
    # w2_ref: (1, 50)   b2_ref: (1, 1) in SMEM   o_ref: (1, B)

    # fc1: contract the feature dim of both operands on the MXU.
    # (50, 10) x (B, 10) contracting dim 1 of each -> (50, B), batch lane-dense.
    h = lax.dot_general(
        w1_ref[...], x_ref[...],
        dimension_numbers=(((1,), (1,)), ((), ())),
        preferred_element_type=jnp.float32,
    )
    h = jnp.maximum(h + b1_ref[...], 0.0)            # bias (lane-broadcast) + ReLU, VPU, f32

    # fc2 on the MXU: (1, 50) @ (50, B) -> (1, B).
    y = jnp.dot(w2_ref[...], h, preferred_element_type=jnp.float32)
    y = y + b2_ref[0, 0]                             # scalar bias from SMEM

    # Sigmoid on the EUP:  sigmoid(z) = 0.5 * (tanh(z/2) + 1)
    o_ref[...] = (0.5 * (jnp.tanh(0.5 * y) + 1.0)).astype(o_ref.dtype)


@jax.jit
def feedforward(x, w1, b1, w2, b2):
    """x: (B, 10) f32. w1: (50, 10), b1: (50,), w2: (1, 50), b2: (1,) (PyTorch conventions)."""
    B = x.shape[0]
    hid = w1.shape[0]

    b1_col = b1.reshape(hid, 1)   # (50, 1) -> lane-broadcast bias
    b2_2d = b2.reshape(1, 1)      # (1, 1)  -> SMEM scalar

    out_t = pl.pallas_call(
        _ffn_kernel,
        out_shape=jax.ShapeDtypeStruct((1, B), jnp.float32),
        in_specs=[
            pl.BlockSpec(memory_space=pltpu.MemorySpace.VMEM),   # x  (B, 10)
            pl.BlockSpec(memory_space=pltpu.MemorySpace.VMEM),   # w1 (50, 10)
            pl.BlockSpec(memory_space=pltpu.MemorySpace.VMEM),   # b1 (50, 1)
            pl.BlockSpec(memory_space=pltpu.MemorySpace.VMEM),   # w2 (1, 50)
            pl.BlockSpec(memory_space=pltpu.MemorySpace.SMEM),   # b2 (1, 1)
        ],
        out_specs=pl.BlockSpec(memory_space=pltpu.MemorySpace.VMEM),
    )(x, w1, b1_col, w2, b2_2d)

    # (1, B) -> (B, 1): same row-major element order, free reshape under jit.
    return out_t.reshape(B, 1)


def _reference(x, w1, b1, w2, b2):
    h = jnp.maximum(x @ w1.T + b1, 0.0)
    z = h @ w2.T + b2
    return 1.0 / (1.0 + jnp.exp(-z))


if __name__ == "__main__":
    key = jax.random.PRNGKey(0)
    kx, k1, kb1, k2, kb2 = jax.random.split(key, 5)

    B, IN, HID, OUT = 100, 10, 50, 1

    x = jax.random.normal(kx, (B, IN), dtype=jnp.float32)

    # Deterministic parameter init (PyTorch-Linear-like uniform bounds).
    bound1 = 1.0 / (IN ** 0.5)
    w1 = jax.random.uniform(k1, (HID, IN), jnp.float32, -bound1, bound1)
    b1 = jax.random.uniform(kb1, (HID,), jnp.float32, -bound1, bound1)
    bound2 = 1.0 / (HID ** 0.5)
    w2 = jax.random.uniform(k2, (OUT, HID), jnp.float32, -bound2, bound2)
    b2 = jax.random.uniform(kb2, (OUT,), jnp.float32, -bound2, bound2)

    y = jax.block_until_ready(feedforward(x, w1, b1, w2, b2))

    y_ref = _reference(x, w1, b1, w2, b2)
    assert y.shape == (B, OUT)
    assert jnp.allclose(y, y_ref, atol=1e-5, rtol=1e-5), "mismatch vs reference"

    print("KERNEL_OK")
</pallas_src>

<mosaic_0001>
module attributes {stable_mosaic.version = 11 : i64} {
  func.func @_ffn_kernel(%arg0: memref<100x10xf32, #tpu.memory_space<vmem>>, %arg1: memref<50x10xf32, #tpu.memory_space<vmem>>, %arg2: memref<50x1xf32, #tpu.memory_space<vmem>>, %arg3: memref<1x50xf32, #tpu.memory_space<vmem>>, %arg4: memref<1x1xf32, #tpu.memory_space<smem>>, %arg5: memref<1x100xf32, #tpu.memory_space<vmem>>) attributes {dimension_semantics = [], scalar_prefetch = 0 : i64, scratch_operands = 0 : i64, tpu.core_type = #tpu.core_type<tc>} {
    %c0 = arith.constant 0 : index
    %c0_0 = arith.constant 0 : index
    %0 = vector.load %arg1[%c0, %c0_0] : memref<50x10xf32, #tpu.memory_space<vmem>>, vector<50x10xf32>
    %c0_1 = arith.constant 0 : index
    %c0_2 = arith.constant 0 : index
    %1 = vector.load %arg0[%c0_1, %c0_2] : memref<100x10xf32, #tpu.memory_space<vmem>>, vector<100x10xf32>
    %cst = arith.constant dense<0.000000e+00> : vector<50x100xf32>
    %2 = tpu.matmul %0, %1, %cst {dimension_numbers = #tpu.dot_dimension_numbers<[1], [1], [0], [0], [0, 0, 1, 0], [], []>} : vector<50x10xf32>, vector<100x10xf32>, vector<50x100xf32> -> vector<50x100xf32>
    %c0_3 = arith.constant 0 : index
    %c0_4 = arith.constant 0 : index
    %3 = vector.load %arg2[%c0_3, %c0_4] : memref<50x1xf32, #tpu.memory_space<vmem>>, vector<50x1xf32>
    %4 = vector.broadcast %3 : vector<50x1xf32> to vector<50x100xf32>
    %5 = arith.addf %2, %4 : vector<50x100xf32>
    %cst_5 = arith.constant 0.000000e+00 : f32
    %6 = vector.broadcast %cst_5 : f32 to vector<50x100xf32>
    %7 = arith.maximumf %5, %6 : vector<50x100xf32>
    %c0_6 = arith.constant 0 : index
    %c0_7 = arith.constant 0 : index
    %8 = vector.load %arg3[%c0_6, %c0_7] : memref<1x50xf32, #tpu.memory_space<vmem>>, vector<1x50xf32>
    %cst_8 = arith.constant dense<0.000000e+00> : vector<1x100xf32>
    %9 = tpu.matmul %8, %7, %cst_8 {dimension_numbers = #tpu.dot_dimension_numbers<[1], [0], [0], [1], [0, 0, 1, 1], [], []>} : vector<1x50xf32>, vector<50x100xf32>, vector<1x100xf32> -> vector<1x100xf32>
    %c0_9 = arith.constant 0 : index
    %c0_10 = arith.constant 0 : index
    %10 = memref.load %arg4[%c0_9, %c0_10] : memref<1x1xf32, #tpu.memory_space<smem>>
    %11 = vector.broadcast %10 : f32 to vector<1x100xf32>
    %12 = arith.addf %9, %11 : vector<1x100xf32>
    %cst_11 = arith.constant 5.000000e-01 : f32
    %13 = vector.broadcast %cst_11 : f32 to vector<1x100xf32>
    %14 = arith.mulf %13, %12 : vector<1x100xf32>
    %15 = math.tanh %14 : vector<1x100xf32>
    %cst_12 = arith.constant 1.000000e+00 : f32
    %16 = vector.broadcast %cst_12 : f32 to vector<1x100xf32>
    %17 = arith.addf %15, %16 : vector<1x100xf32>
    %cst_13 = arith.constant 5.000000e-01 : f32
    %18 = vector.broadcast %cst_13 : f32 to vector<1x100xf32>
    %19 = arith.mulf %18, %17 : vector<1x100xf32>
    %c0_14 = arith.constant 0 : index
    %c0_15 = arith.constant 0 : index
    %20 = vector.load %arg5[%c0_14, %c0_15] : memref<1x100xf32, #tpu.memory_space<vmem>>, vector<1x100xf32>
    tpu.vector_store %arg5[%c0_14, %c0_15], %19 {strides = array<i32>} : memref<1x100xf32, #tpu.memory_space<vmem>>, vector<1x100xf32>,
    return
  }
}

</mosaic_0001>

<llo_original>
// kernel: feedforward.1
$region0: #{feedforward.1}
  #allocation0 [shape = 'u32[]', space=smem, size = 0x4, offset = 0x4, fixed_abs, tag = 'smem constant byte address 0x4 - core index']
  #allocation1 [shape = 'u32[144,128]{1,0:T(1,128)}', space=vmem, size = 0x12000, scoped, tag = 'internal scratch']
  #allocation2 [shape = 'f32[1,1]{1,0:T(1,128)S(6)}', space=smem, size = 0x200, scoped, tag = 'scoped memory for feedforward.1']
  %s0 = inlined_call_operand.vmem [shape: f32[100,10], index: 0, kind: input, shape index: {}]
  %s1 = inlined_call_operand.vmem [shape: f32[50,10], index: 1, kind: input, shape index: {}]
  %s2 = inlined_call_operand.vmem [shape: f32[50,1], index: 2, kind: input, shape index: {}]
  %s3 = inlined_call_operand.vmem [shape: f32[1,50], index: 3, kind: input, shape index: {}]
  %s4 = inlined_call_operand.<no memory space> [shape: f32[1,1], index: 4, kind: input, shape index: {}]
  %s5 = inlined_call_operand.hbm [shape: f32[1,100], index: 5, kind: output, shape index: {}]
  %s6 = sld [smem:[#allocation0]]
  $region30: #{feedforward.1} parent=0
    _
  %s8 = ssub.s32 1, %s6
  %s9 = scalar_select 0, %s8, %s6
  %10 = sst [smem:[#allocation2]] %s4
  $region1: #{feedforward.1} parent=0
    #allocation3 [shape = 'u8[512]{0}', space=vmem, size = 0x400, scoped, tag = 'output window, operand 0, single buffered']
    #allocation4 [shape = 's32[1]{0}', space=sflag, size = 0x4, scoped, tag = 'scoped memory for feedforward.1']
    %11 = vsyncpa [#allocation4], 0
    // Predicated region
    $region2: #{feedforward.1} parent=1 // pred_check
      _
    $region3: #{feedforward.1} parent=1 // pred_check_branch
      %13 = sbr.rel (0) target = $region5
    $region4: #{feedforward.1} parent=1 // pred_region
      _
    $region5: #{feedforward.1} parent=1 // pred_fallthru
      _
    // Predicated region
    $region6: #{feedforward.1} parent=1 // pred_check
      _
    $region7: #{feedforward.1} parent=1 // pred_check_branch
      %15 = sbr.rel (0) target = $region9
    $region8: #{feedforward.1} parent=1 // pred_region
      _
    $region9: #{feedforward.1} parent=1 // pred_fallthru
      _
    // Predicated region
    $region10: #{feedforward.1} parent=1 // pred_check
      _
    $region11: #{feedforward.1} parent=1 // pred_check_branch
      %17 = sbr.rel (0) target = $region13
    $region12: #{feedforward.1} parent=1 // pred_region
      _
    $region13: #{feedforward.1} parent=1 // pred_fallthru
      _
    // Predicated region
    $region14: #{feedforward.1} parent=1 // pred_check
      _
    $region15: #{feedforward.1} parent=1 // pred_check_branch
      %19 = sbr.rel (0) target = $region17
    $region16: #{feedforward.1} parent=1 // pred_region
      _
    $region17: #{feedforward.1} parent=1 // pred_fallthru
      _
    // Predicated region
    $region18: #{feedforward.1} parent=1 // pred_check
      _
    $region19: #{feedforward.1} parent=1 // pred_check_branch
      %21 = sbr.rel (0) target = $region21
    $region20: #{feedforward.1} parent=1 // pred_region
      _
    $region21: #{feedforward.1} parent=1 // pred_fallthru
      _
    %v22 = vld [vmem:[%s1] sm:$0xff]
    %v23 = vld [vmem:[%s1 + $0x8] sm:$0xff]
    %v24 = vld [vmem:[%s1 + $0x10] sm:$0xff]
    %v25 = vld [vmem:[%s1 + $0x18] sm:$0xff]
    %v26 = vld [vmem:[%s1 + $0x20] sm:$0xff]
    %v27 = vld [vmem:[%s1 + $0x28] sm:$0xff]
    %v28 = vld [vmem:[%s1 + $0x30] sm:$0x3]
    %v29 = vld [vmem:[%s0] sm:$0xff]
    %v30 = vld [vmem:[%s0 + $0x8] sm:$0xff]
    %v31 = vld [vmem:[%s0 + $0x10] sm:$0xff]
    %v32 = vld [vmem:[%s0 + $0x18] sm:$0xff]
    %v33 = vld [vmem:[%s0 + $0x20] sm:$0xff]
    %v34 = vld [vmem:[%s0 + $0x28] sm:$0xff]
    %v35 = vld [vmem:[%s0 + $0x30] sm:$0xff]
    %v36 = vld [vmem:[%s0 + $0x38] sm:$0xff]
    %v37 = vld [vmem:[%s0 + $0x40] sm:$0xff]
    %v38 = vld [vmem:[%s0 + $0x48] sm:$0xff]
    %v39 = vld [vmem:[%s0 + $0x50] sm:$0xff]
    %v40 = vld [vmem:[%s0 + $0x58] sm:$0xff]
    %v41 = vld [vmem:[%s0 + $0x60] sm:$0xf]
    %v42 = vld [vmem:[%s2] sm:$0xff]
    %v43 = vld [vmem:[%s2 + $0x8] sm:$0xff]
    %v44 = vld [vmem:[%s2 + $0x10] sm:$0xff]
    %v45 = vld [vmem:[%s2 + $0x18] sm:$0xff]
    %v46 = vld [vmem:[%s2 + $0x20] sm:$0xff]
    %v47 = vld [vmem:[%s2 + $0x28] sm:$0xff]
    %v48 = vld [vmem:[%s2 + $0x30] sm:$0x3]
    %50 = vset.pattern.permute.xlu0 0
    %51 = vperm.xlu0 %50, %v42
    %v52 = vpop.permute.xlu0 %51
    %55 = vset.pattern.permute.xlu0 0
    %56 = vperm.xlu0 %55, %v43
    %v57 = vpop.permute.xlu0 %56
    %60 = vset.pattern.permute.xlu0 0
    %61 = vperm.xlu0 %60, %v44
    %v62 = vpop.permute.xlu0 %61
    %65 = vset.pattern.permute.xlu0 0
    %66 = vperm.xlu0 %65, %v45
    %v67 = vpop.permute.xlu0 %66
    %70 = vset.pattern.permute.xlu0 0
    %71 = vperm.xlu0 %70, %v46
    %v72 = vpop.permute.xlu0 %71
    %75 = vset.pattern.permute.xlu0 0
    %76 = vperm.xlu0 %75, %v47
    %v77 = vpop.permute.xlu0 %76
    %80 = vset.pattern.permute.xlu0 0
    %81 = vperm.xlu0 %80, %v48
    %v82 = vpop.permute.xlu0 %81
    %vm84 = vcmask 80896
    %v86 = vsel %vm84, %v22, 0
    %v89 = vsel %vm84, %v23, 0
    %v92 = vsel %vm84, %v24, 0
    %v95 = vsel %vm84, %v25, 0
    %v98 = vsel %vm84, %v26, 0
    %v101 = vsel %vm84, %v27, 0
    %v104 = vsel %vm84, %v28, 0
    %v107 = vsel %vm84, %v29, 0
    %v110 = vsel %vm84, %v30, 0
    %v113 = vsel %vm84, %v31, 0
    %v116 = vsel %vm84, %v32, 0
    %v119 = vsel %vm84, %v33, 0
    %v122 = vsel %vm84, %v34, 0
    %v125 = vsel %vm84, %v35, 0
    %v128 = vsel %vm84, %v36, 0
    %v131 = vsel %vm84, %v37, 0
    %v134 = vsel %vm84, %v38, 0
    %v137 = vsel %vm84, %v39, 0
    %v140 = vsel %vm84, %v40, 0
    %v143 = vsel %vm84, %v41, 0
    %145 = vmatprep.subr.mxu0 0.0
    %146 = vmatpush1.xpose.msra.mxu0 %v107
    %147 = vmatprep.subr.mxu0 0.0
    %148 = vmatpush1.xpose.msra.mxu0 %v110
    %149 = vmatprep.subr.mxu0 0.0
    %150 = vmatpush1.xpose.msra.mxu0 %v113
    %151 = vmatprep.subr.mxu0 0.0
    %152 = vmatpush1.xpose.msra.mxu0 %v116
    %153 = vmatprep.subr.mxu0 0.0
    %154 = vmatpush1.xpose.msra.mxu0 %v119
    %155 = vmatprep.subr.mxu0 0.0
    %156 = vmatpush1.xpose.msra.mxu0 %v122
    %157 = vmatprep.subr.mxu0 0.0
    %158 = vmatpush1.xpose.msra.mxu0 %v125
    %159 = vmatprep.subr.mxu0 0.0
    %160 = vmatpush1.xpose.msra.mxu0 %v128
    %161 = vmatprep.subr.mxu0 0.0
    %162 = vmatpush1.xpose.msra.mxu0 %v131
    %163 = vmatprep.subr.mxu0 0.0
    %164 = vmatpush1.xpose.msra.mxu0 %v134
    %165 = vmatprep.subr.mxu0 0.0
    %166 = vmatpush1.xpose.msra.mxu0 %v137
    %167 = vmatprep.subr.mxu0 0.0
    %168 = vmatpush1.xpose.msra.mxu0 %v140
    %169 = vmatprep.subr.mxu0 0.0
    %170 = vmatpush1.xpose.msra.mxu0 %v143
    %171 = vmatprep.subr.mxu0 0.0
    %172 = vmatpush1.xpose.msra.mxu0 0.0
    %173 = vmatprep.subr.mxu0 0.0
    %174 = vmatpush1.xpose.msra.mxu0 0.0
    %175 = vmatprep.subr.mxu0 0.0
    %176 = vmatpush1.xpose.msra.mxu0 0.0
    %177 = vmatprep.subr.mxu0 0.0
    %178 = vmatpush1.xpose.msra.mxu0 0.0
    %179 = vmatprep.subr.mxu0 0.0
    %180 = vmatpush1.xpose.msra.mxu0 0.0
    %181 = vmatprep.subr.mxu0 0.0
    %182 = vmatpush1.xpose.msra.mxu0 0.0
    %183 = vmatprep.subr.mxu0 0.0
    %184 = vmatpush1.xpose.msra.mxu0 0.0
    %185 = vmatprep.subr.mxu0 0.0
    %186 = vmatpush1.xpose.msra.mxu0 0.0
    %187 = vmatprep.subr.mxu0 0.0
    %188 = vmatpush1.xpose.msra.mxu0 0.0
    %189 = vmatprep.subr.mxu0 0.0
    %190 = vmatpush1.xpose.msra.mxu0 0.0
    %191 = vmatprep.subr.mxu0 0.0
    %192 = vmatpush1.xpose.msra.mxu0 0.0
    %193 = vmatprep.subr.mxu0 0.0
    %194 = vmatpush1.xpose.msra.mxu0 0.0
    %195 = vmatprep.subr.mxu0 0.0
    %196 = vmatpush1.xpose.msra.mxu0 0.0
    %197 = vmatprep.subr.mxu0 0.0
    %198 = vmatpush1.xpose.msra.mxu0 0.0
    %199 = vmatprep.subr.mxu0 0.0
    %200 = vmatpush1.xpose.msra.mxu0 0.0
    %201 = vmatprep.subr.mxu0 0.0
    %202 = vmatpush1.xpose.msra.mxu0 0.0
    %203 = vmatprep.subr.mxu0 0.0
    %204 = vmatpush1.xpose.msra.mxu0 0.0
    %205 = vmatprep.subr.mxu0 0.0
    %206 = vmatpush1.xpose.msra.mxu0 0.0
    %207 = vmatprep.subr.mxu0 0.0
    %208 = vmatpush1.xpose.msra.mxu0 0.0
    %209 = vmatprep.mubr.f32.mxu0 0.0
    %210 = vmatmul.mubr.f32.gmra.mrb[0].mxu0 %v86
    %v211 = vpop.f32.mrb[0].mxu0
    %v212 = vadd.f32 %v52, %v211
    %v213 = vpop.f32.mrb[0].mxu0
    %214 = vmatprep.mubr.f32.mxu0 0.0
    %215 = vmatmul.mubr.f32.gmra.mrb[0].mxu0 %v89
    %v216 = vpop.f32.mrb[0].mxu0
    %v217 = vadd.f32 %v57, %v216
    %v218 = vpop.f32.mrb[0].mxu0
    %219 = vmatprep.mubr.f32.mxu0 0.0
    %220 = vmatmul.mubr.f32.gmra.mrb[0].mxu0 %v92
    %v221 = vpop.f32.mrb[0].mxu0
    %v222 = vadd.f32 %v62, %v221
    %v223 = vpop.f32.mrb[0].mxu0
    %224 = vmatprep.mubr.f32.mxu0 0.0
    %225 = vmatmul.mubr.f32.gmra.mrb[0].mxu0 %v95
    %v226 = vpop.f32.mrb[0].mxu0
    %v227 = vadd.f32 %v67, %v226
    %v228 = vpop.f32.mrb[0].mxu0
    %229 = vmatprep.mubr.f32.mxu0 0.0
    %230 = vmatmul.mubr.f32.gmra.mrb[0].mxu0 %v98
    %v231 = vpop.f32.mrb[0].mxu0
    %v232 = vadd.f32 %v72, %v231
    %v233 = vpop.f32.mrb[0].mxu0
    %234 = vmatprep.mubr.f32.mxu0 0.0
    %235 = vmatmul.mubr.f32.gmra.mrb[0].mxu0 %v101
    %v236 = vpop.f32.mrb[0].mxu0
    %v237 = vadd.f32 %v77, %v236
    %v238 = vpop.f32.mrb[0].mxu0
    %239 = vmatprep.mubr.f32.mxu0 0.0
    %240 = vmatmul.mubr.f32.gmra.mrb[0].mxu0 %v104
    %v241 = vpop.f32.mrb[0].mxu0
    %v242 = vadd.f32 %v82, %v241
    %v243 = vpop.f32.mrb[0].mxu0
    %244 = vdwg.mxu0
    %v245 = vmax.f32 %v212, 0.0
    %v246 = vmax.f32 %v217, 0.0
    %v247 = vmax.f32 %v222, 0.0
    %v248 = vmax.f32 %v227, 0.0
    %v249 = vmax.f32 %v232, 0.0
    %v250 = vmax.f32 %v237, 0.0
    %v251 = vmax.f32 %v242, 0.0
    %v252 = vld [vmem:[%s3] sm:$0x1]
    %s253 = sld [smem:[#allocation2]]
    %v254 = vstv %s253
    %vm255 = vcmask 408576
    %v257 = vsel %vm255, %v252, 0
    %vm259 = vcmask 1041408
    %v261 = vsel %vm259, %v251, 0
    %263 = vmatprep.subr.mxu0 0.0
    %264 = vmatpush1.msra.mxu0 %v245
    %265 = vmatprep.subr.mxu0 0.0
    %266 = vmatpush1.msra.mxu0 %v246
    %267 = vmatprep.subr.mxu0 0.0
    %268 = vmatpush1.msra.mxu0 %v247
    %269 = vmatprep.subr.mxu0 0.0
    %270 = vmatpush1.msra.mxu0 %v248
    %271 = vmatprep.subr.mxu0 0.0
    %272 = vmatpush1.msra.mxu0 %v249
    %273 = vmatprep.subr.mxu0 0.0
    %274 = vmatpush1.msra.mxu0 %v250
    %275 = vmatprep.subr.mxu0 0.0
    %276 = vmatpush1.msra.mxu0 %v261
    %277 = vmatprep.subr.mxu0 0.0
    %278 = vmatpush1.msra.mxu0 0.0
    %279 = vmatprep.subr.mxu0 0.0
    %280 = vmatpush1.msra.mxu0 0.0
    %281 = vmatprep.subr.mxu0 0.0
    %282 = vmatpush1.msra.mxu0 0.0
    %283 = vmatprep.subr.mxu0 0.0
    %284 = vmatpush1.msra.mxu0 0.0
    %285 = vmatprep.subr.mxu0 0.0
    %286 = vmatpush1.msra.mxu0 0.0
    %287 = vmatprep.subr.mxu0 0.0
    %288 = vmatpush1.msra.mxu0 0.0
    %289 = vmatprep.subr.mxu0 0.0
    %290 = vmatpush1.msra.mxu0 0.0
    %291 = vmatprep.subr.mxu0 0.0
    %292 = vmatpush1.msra.mxu0 0.0
    %293 = vmatprep.subr.mxu0 0.0
    %294 = vmatpush1.msra.mxu0 0.0
    %295 = vmatprep.subr.mxu0 0.0
    %296 = vmatpush1.msra.mxu0 0.0
    %297 = vmatprep.subr.mxu0 0.0
    %298 = vmatpush1.msra.mxu0 0.0
    %299 = vmatprep.subr.mxu0 0.0
    %300 = vmatpush1.msra.mxu0 0.0
    %301 = vmatprep.subr.mxu0 0.0
    %302 = vmatpush1.msra.mxu0 0.0
    %303 = vmatprep.subr.mxu0 0.0
    %304 = vmatpush1.msra.mxu0 0.0
    %305 = vmatprep.subr.mxu0 0.0
    %306 = vmatpush1.msra.mxu0 0.0
    %307 = vmatprep.subr.mxu0 0.0
    %308 = vmatpush1.msra.mxu0 0.0
    %309 = vmatprep.subr.mxu0 0.0
    %310 = vmatpush1.msra.mxu0 0.0
    %311 = vmatprep.subr.mxu0 0.0
    %312 = vmatpush1.msra.mxu0 0.0
    %313 = vmatprep.subr.mxu0 0.0
    %314 = vmatpush1.msra.mxu0 0.0
    %315 = vmatprep.subr.mxu0 0.0
    %316 = vmatpush1.msra.mxu0 0.0
    %317 = vmatprep.subr.mxu0 0.0
    %318 = vmatpush1.msra.mxu0 0.0
    %319 = vmatprep.subr.mxu0 0.0
    %320 = vmatpush1.msra.mxu0 0.0
    %321 = vmatprep.subr.mxu0 0.0
    %322 = vmatpush1.msra.mxu0 0.0
    %323 = vmatprep.subr.mxu0 0.0
    %324 = vmatpush1.msra.mxu0 0.0
    %325 = vmatprep.subr.mxu0 0.0
    %326 = vmatpush1.msra.mxu0 0.0
    %327 = vmatprep.mubr.f32.mxu0 0.0
    %328 = vmatmul.mubr.f32.gmra.mrb[0].mxu0 %v257
    %v329 = vpop.f32.mrb[0].mxu0
    %v330 = vadd.f32 %v254, %v329
    %v331 = vpop.f32.mrb[0].mxu0
    %332 = vdwg.mxu0
    %v333 = vmul.f32 %v330, 0.5
    %v334 = vtanh.pop %v333
    %v335 = vadd.f32 %v334, 1.0
    %v336 = vmul.f32 %v335, 0.5
    %vm337 = vcmask 811008
    %338 = vst.msk [vmem:[#allocation3] sm:$0x1] %vm337, %v336
    // Predicated region
    $region22: #{feedforward.1} parent=1 // pred_check
      _
    $region23: #{feedforward.1} parent=1 // pred_check_branch
      %340 = sbr.rel (0) target = $region25
    $region24: #{feedforward.1} parent=1 // pred_region
      %s342 = ssub.s32 16, 16
      %343 = vsyncadd [#allocation4], %s342
      %s345 = sshll.u32 [#allocation3], 4
      %s346 = int_to_ptr.vmem [resolvable:$true] %s345
      %348 = dma.vmem_to_hbm [thread:$0]  %s346, 16, %s5, [#allocation4]
    $region25: #{feedforward.1} parent=1 // pred_fallthru
      _
    // Predicated region
    $region26: #{feedforward.1} parent=1 // pred_check
      _
    $region27: #{feedforward.1} parent=1 // pred_check_branch
      %350 = sbr.rel (0) target = $region29
    $region28: #{feedforward.1} parent=1 // pred_region
      %351 = dma.done [#allocation4], 16
    $region29: #{feedforward.1} parent=1 // pred_fallthru
      _
    %352 = vsyncpa [#allocation4], 1

</llo_original>
